<compile_context>
chip_gen: v5e
topology: v5e:2x2
jax: 0.10.0
libtpu: 0.0.40
codegen_flags: <defaults>
</compile_context>

<pallas_src>
import functools
from typing import NamedTuple

import jax
import jax.numpy as jnp
from jax import lax
from jax.experimental import pallas as pl
from jax.experimental.pallas import tpu as pltpu

EPS = 1e-5  # nn.LayerNorm default eps


# ----------------------------------------------------------------------------- helpers
def _round_up(a, b):
    return (a + b - 1) // b * b


def _gelu_exact(x):
    # PyTorch F.gelu / nn.GELU default (approximate='none'): 0.5*x*(1+erf(x/sqrt(2)))
    return 0.5 * x * (1.0 + lax.erf(x * jnp.float32(0.7071067811865476)))


def _layernorm_fused(x, gamma, beta, n_true):
    # One-pass stats: var = E[x^2] - mu^2.  Padded feature lanes are zero in both x
    # and gamma/beta, so dividing by the *true* width gives exact LN statistics and
    # exactly-zero output in the padded lanes.
    inv_n = jnp.float32(1.0 / n_true)
    s = jnp.sum(x, axis=-1, keepdims=True)
    ss = jnp.sum(x * x, axis=-1, keepdims=True)
    mu = s * inv_n
    var = jnp.maximum(ss * inv_n - mu * mu, 0.0)
    return (x - mu) * lax.rsqrt(var + EPS) * gamma + beta


def _vmem_capacity_bytes():
    try:
        cap = int(getattr(pltpu.get_tpu_info(), "vmem_capacity_bytes"))
        if cap > 0:
            return cap
    except Exception:
        pass
    return 64 << 20  # conservative fallback (v7x per-TC VMEM)


def _pick_hidden_tile(hp, want):
    want = max(128, (int(want) // 128) * 128)
    t = min(want, hp)
    while hp % t:
        t -= 128
    return t


# ----------------------------------------------------------------------------- kernels
def _resident_kernel(x_ref,
                     g1_ref, bt1_ref, w1_ref, b1_ref,
                     g2_ref, bt2_ref, w2_ref, b2_ref,
                     o_ref, *, d_true, h_true, mxu_dtype):
    """Whole weights resident in VMEM; one row tile per grid step."""
    x = x_ref[...].astype(jnp.float32)                               # (tr, Dp)

    # net1: LayerNorm(D) -> Linear(D, H) -> GELU   (Dropout = identity at eval)
    h = _layernorm_fused(x, g1_ref[...], bt1_ref[...], d_true)
    h = jnp.dot(h.astype(mxu_dtype), w1_ref[...],
                preferred_element_type=jnp.float32) + b1_ref[...]
    h = _gelu_exact(h)                                               # (tr, Hp)

    # net2: LayerNorm(H) -> Linear(H, D)
    h2 = _layernorm_fused(h, g2_ref[...], bt2_ref[...], h_true)
    out = jnp.dot(h2.astype(mxu_dtype), w2_ref[...],
                  preferred_element_type=jnp.float32) + b2_ref[...]

    # residual + final GELU
    o_ref[...] = _gelu_exact(out + x).astype(o_ref.dtype)


def _streaming_kernel(x_ref,
                      g1_ref, bt1_ref, w1_ref, b1_ref,
                      g2_ref, w2_ref, c1_ref, c2b2_ref,
                      o_ref, xn_s, acc_s, s_s, ss_s,
                      *, d_true, h_true, mxu_dtype):
    """Hidden axis streamed in chunks (grid axis 1, 'arbitrary').

    Single pass over H chunks per row tile:
      hk   = GELU(LN1(x) @ W1[:, k] + b1[k])
      acc += (hk * g2[k]) @ W2[k, :]
      s   += sum(hk), ss += sum(hk^2)
    Finalize:  LN2(h) @ W2 + b2 = rsig*acc - rsig*mu*c1 + c2b2
      with c1 = g2 @ W2, c2b2 = bt2 @ W2 + b2 precomputed in prepare_params.
    """
    k = pl.program_id(1)
    nk = pl.num_programs(1)

    @pl.when(k == 0)
    def _():
        x = x_ref[...].astype(jnp.float32)
        xn_s[...] = _layernorm_fused(x, g1_ref[...], bt1_ref[...], d_true)
        acc_s[...] = jnp.zeros_like(acc_s)
        s_s[...] = jnp.zeros_like(s_s)
        ss_s[...] = jnp.zeros_like(ss_s)

    hk = jnp.dot(xn_s[...].astype(mxu_dtype), w1_ref[...],
                 preferred_element_type=jnp.float32) + b1_ref[...]
    hk = _gelu_exact(hk)                                             # (tr, tk)

    s_s[...] += jnp.sum(hk, axis=-1, keepdims=True)
    ss_s[...] += jnp.sum(hk * hk, axis=-1, keepdims=True)
    acc_s[...] += jnp.dot((hk * g2_ref[...]).astype(mxu_dtype), w2_ref[...],
                          preferred_element_type=jnp.float32)

    @pl.when(k == nk - 1)
    def _():
        inv_h = jnp.float32(1.0 / h_true)
        mu = s_s[...] * inv_h
        var = jnp.maximum(ss_s[...] * inv_h - mu * mu, 0.0)
        rsig = lax.rsqrt(var + EPS)
        out = rsig * acc_s[...] - (rsig * mu) * c1_ref[...] + c2b2_ref[...]
        o_ref[...] = _gelu_exact(out + x_ref[...].astype(jnp.float32)).astype(o_ref.dtype)


# ----------------------------------------------------------------------------- wrapper
class PreparedFF(NamedTuple):
    arrays: dict
    d: int
    h: int
    dp: int
    hp: int


def prepare_params(params, use_bf16_mxu=True):
    """One-time padding / casting of parameters (hoisted out of the per-call path)."""
    D, H = params["w1"].shape
    Dp, Hp = _round_up(D, 128), _round_up(H, 128)
    w_dtype = jnp.bfloat16 if use_bf16_mxu else jnp.float32
    f32 = jnp.float32

    arrs = {
        "g1": jnp.pad(params["ln1_g"].astype(f32), (0, Dp - D)).reshape(1, Dp),
        "bt1": jnp.pad(params["ln1_b"].astype(f32), (0, Dp - D)).reshape(1, Dp),
        "w1": jnp.pad(params["w1"].astype(f32), ((0, Dp - D), (0, Hp - H))).astype(w_dtype),
        "b1": jnp.pad(params["b1"].astype(f32), (0, Hp - H)).reshape(1, Hp),
        "g2": jnp.pad(params["ln2_g"].astype(f32), (0, Hp - H)).reshape(1, Hp),
        "bt2": jnp.pad(params["ln2_b"].astype(f32), (0, Hp - H)).reshape(1, Hp),
        "w2": jnp.pad(params["w2"].astype(f32), ((0, Hp - H), (0, Dp - D))).astype(w_dtype),
        "b2": jnp.pad(params["b2"].astype(f32), (0, Dp - D)).reshape(1, Dp),
    }
    # Streaming-path parameter constants (exact f32, independent of x):
    c1 = jnp.dot(params["ln2_g"].astype(f32), params["w2"].astype(f32),
                 precision=lax.Precision.HIGHEST)
    c2 = jnp.dot(params["ln2_b"].astype(f32), params["w2"].astype(f32),
                 precision=lax.Precision.HIGHEST) + params["b2"].astype(f32)
    arrs["c1"] = jnp.pad(c1, (0, Dp - D)).reshape(1, Dp)
    arrs["c2b2"] = jnp.pad(c2, (0, Dp - D)).reshape(1, Dp)
    return PreparedFF(arrays=arrs, d=D, h=H, dp=Dp, hp=Hp)


@functools.partial(jax.jit, static_argnames=("dims", "row_tile", "streaming",
                                              "hidden_tile", "vmem_limit"))
def _basicff_impl(x, arrs, *, dims, row_tile, streaming, hidden_tile, vmem_limit):
    D, H, Dp, Hp = dims
    T = x.shape[0]
    tr = row_tile
    Tp = _round_up(max(T, 1), tr)

    xp = jnp.pad(x.astype(jnp.float32), ((0, Tp - T), (0, Dp - D)))

    mxu_dtype = arrs["w1"].dtype
    wbytes = jnp.dtype(mxu_dtype).itemsize
    n_row_tiles = Tp // tr
    weight_bytes = (Dp * Hp + Hp * Dp) * wbytes

    cost = pl.CostEstimate(
        flops=int(4 * Tp * Dp * Hp),
        transcendentals=int(Tp * (Dp + Hp + 2)),
        bytes_accessed=int(2 * Tp * Dp * 4
                           + (weight_bytes * n_row_tiles if streaming else weight_bytes)
                           + 6 * (Dp + Hp) * 4),
    )

    resident = pl.BlockSpec(memory_space=pltpu.MemorySpace.VMEM)

    if not streaming:
        kernel = functools.partial(_resident_kernel, d_true=D, h_true=H,
                                   mxu_dtype=mxu_dtype)
        grid_spec = pltpu.PrefetchScalarGridSpec(
            num_scalar_prefetch=0,
            grid=(n_row_tiles,),
            in_specs=[pl.BlockSpec((tr, Dp), lambda i: (i, 0))] + [resident] * 8,
            out_specs=pl.BlockSpec((tr, Dp), lambda i: (i, 0)),
        )
        operands = (xp, arrs["g1"], arrs["bt1"], arrs["w1"], arrs["b1"],
                    arrs["g2"], arrs["bt2"], arrs["w2"], arrs["b2"])
        semantics = ("parallel",)
    else:
        tk = hidden_tile
        kernel = functools.partial(_streaming_kernel, d_true=D, h_true=H,
                                   mxu_dtype=mxu_dtype)
        grid_spec = pltpu.PrefetchScalarGridSpec(
            num_scalar_prefetch=0,
            grid=(n_row_tiles, Hp // tk),
            in_specs=[
                pl.BlockSpec((tr, Dp), lambda i, k: (i, 0)),       # x row tile
                resident, resident,                                 # g1, bt1
                pl.BlockSpec((Dp, tk), lambda i, k: (0, k)),        # w1 column chunk
                pl.BlockSpec((1, tk), lambda i, k: (0, k)),         # b1 chunk
                pl.BlockSpec((1, tk), lambda i, k: (0, k)),         # g2 chunk
                pl.BlockSpec((tk, Dp), lambda i, k: (k, 0)),        # w2 row chunk
                resident, resident,                                 # c1, c2b2
            ],
            out_specs=pl.BlockSpec((tr, Dp), lambda i, k: (i, 0)),
            scratch_shapes=[
                pltpu.VMEM((tr, Dp), jnp.float32),   # LN1(x) cache
                pltpu.VMEM((tr, Dp), jnp.float32),   # matmul-2 accumulator
                pltpu.VMEM((tr, 1), jnp.float32),    # sum(h)
                pltpu.VMEM((tr, 1), jnp.float32),    # sum(h^2)
            ],
        )
        operands = (xp, arrs["g1"], arrs["bt1"], arrs["w1"], arrs["b1"],
                    arrs["g2"], arrs["w2"], arrs["c1"], arrs["c2b2"])
        semantics = ("parallel", "arbitrary")

    out = pl.pallas_call(
        kernel,
        out_shape=jax.ShapeDtypeStruct((Tp, Dp), x.dtype),
        grid_spec=grid_spec,
        compiler_params=pltpu.CompilerParams(
            dimension_semantics=semantics,
            vmem_limit_bytes=vmem_limit,
        ),
        cost_estimate=cost,
    )(*operands)

    return out[:T, :D]


def basicff(x, prep: PreparedFF, *, row_tile=None, weight_streaming=None, hidden_tile=None):
    """x: (tokens, in_dim) float32. prep: output of prepare_params()."""
    T, D = x.shape
    if D != prep.d:
        raise ValueError(f"x feature dim {D} != prepared in_dim {prep.d}")

    cap = _vmem_capacity_bytes()
    big_vmem = cap >= (96 << 20)                 # v5e/v6e: 128 MiB; v7x: 64 MiB per TC
    ceiling = cap - ((16 << 20) if big_vmem else (8 << 20))

    if row_tile is None:
        row_tile = 512 if big_vmem else 256      # bigger tiles amortize per-step cost
    tr = max(8, (int(row_tile) // 8) * 8)
    tr = min(tr, _round_up(max(T, 1), 8))        # don't over-allocate for tiny T

    Dp, Hp = prep.dp, prep.hp
    wbytes = jnp.dtype(prep.arrays["w1"].dtype).itemsize

    resident_need = int(
        4 * tr * Dp * 4                          # x-in + out tiles, double-buffered
        + (Dp * Hp + Hp * Dp) * wbytes           # resident weights
        + 4 * (Dp + Hp) * 4                      # gammas / betas / biases
        + 6 * tr * max(Dp, Hp) * 4               # live f32 intermediates headroom
    ) + (4 << 20)

    if weight_streaming is None:
        weight_streaming = resident_need > ceiling   # e.g. large D*H on v7x

    if weight_streaming:
        tk = _pick_hidden_tile(Hp, 512 if hidden_tile is None else hidden_tile)
        need = int(
            4 * tr * Dp * 4
            + 2 * (Dp * tk + tk * Dp) * wbytes   # double-buffered weight chunks
            + 2 * tr * Dp * 4 + 8 * tr * 4       # scratch
            + 4 * tr * max(Dp, tk) * 4
        ) + (4 << 20)
    else:
        tk = 0
        need = resident_need

    vmem_limit = int(min(max(need, 32 << 20), ceiling))

    return _basicff_impl(x, prep.arrays,
                         dims=(prep.d, prep.h, prep.dp, prep.hp),
                         row_tile=tr, streaming=bool(weight_streaming),
                         hidden_tile=tk, vmem_limit=vmem_limit)


# ----------------------------------------------------------------------------- reference
def init_params(key, in_dim, hidden_dim):
    k1, k2, k3, k4 = jax.random.split(key, 4)
    lim1 = 1.0 / jnp.sqrt(in_dim)
    lim2 = 1.0 / jnp.sqrt(hidden_dim)
    return {
        "ln1_g": jnp.ones((in_dim,), jnp.float32),
        "ln1_b": jnp.zeros((in_dim,), jnp.float32),
        "w1": jax.random.uniform(k1, (in_dim, hidden_dim), jnp.float32, -lim1, lim1),
        "b1": jax.random.uniform(k2, (hidden_dim,), jnp.float32, -lim1, lim1),
        "ln2_g": jnp.ones((hidden_dim,), jnp.float32),
        "ln2_b": jnp.zeros((hidden_dim,), jnp.float32),
        "w2": jax.random.uniform(k3, (hidden_dim, in_dim), jnp.float32, -lim2, lim2),
        "b2": jax.random.uniform(k4, (in_dim,), jnp.float32, -lim2, lim2),
    }


def _layernorm_ref(x, gamma, beta):
    mu = jnp.mean(x, axis=-1, keepdims=True)
    var = jnp.mean((x - mu) ** 2, axis=-1, keepdims=True)
    return (x - mu) * lax.rsqrt(var + EPS) * gamma + beta


def basicff_ref(x, params):
    """Pure-JAX reference for correctness checking (inference semantics)."""
    h = _layernorm_ref(x, params["ln1_g"], params["ln1_b"])
    h = h @ params["w1"] + params["b1"]
    h = _gelu_exact(h)
    h2 = _layernorm_ref(h, params["ln2_g"], params["ln2_b"])
    out = h2 @ params["w2"] + params["b2"]
    return _gelu_exact(out + x)


# ----------------------------------------------------------------------------- main
if __name__ == "__main__":
    key = jax.random.PRNGKey(0)
    kx, kp, kp2 = jax.random.split(key, 3)

    # Small shapes consistent with the module.
    batch, seq, in_dim, hidden_dim = 2, 8, 32, 64
    x = jax.random.normal(kx, (batch, seq, in_dim), jnp.float32)
    x2d = x.reshape(batch * seq, in_dim)
    params = init_params(kp, in_dim, hidden_dim)
    ref = basicff_ref(x2d, params)

    # 1) f32-MXU resident-weight path: tight match to the exact-erf reference.
    prep_f32 = prepare_params(params, use_bf16_mxu=False)
    out = basicff(x2d, prep_f32)
    jax.block_until_ready(out)
    assert jnp.allclose(out, ref, atol=1e-5, rtol=1e-5), "resident f32 mismatch"

    # 2) bf16-MXU (default perf mode), resident weights, f32 accumulation.
    prep_bf16 = prepare_params(params)
    out = basicff(x2d, prep_bf16)
    jax.block_until_ready(out)
    assert jnp.allclose(out, ref, atol=5e-2, rtol=5e-2), "resident bf16 mismatch"

    # 3) Weight-streaming path (hidden-axis chunking, the v7x / large-D*H layout),
    #    forced here at a small shape with 2 hidden chunks to exercise the path.
    in2, hid2 = 32, 256
    params2 = init_params(kp2, in2, hid2)
    x2 = jax.random.normal(kx, (batch * seq, in2), jnp.float32)
    ref2 = basicff_ref(x2, params2)

    prep2_bf16 = prepare_params(params2)
    out2 = basicff(x2, prep2_bf16, weight_streaming=True, hidden_tile=128)
    jax.block_until_ready(out2)
    assert jnp.allclose(out2, ref2, atol=5e-2, rtol=5e-2), "streaming bf16 mismatch"

    prep2_f32 = prepare_params(params2, use_bf16_mxu=False)
    out3 = basicff(x2, prep2_f32, weight_streaming=True, hidden_tile=128)
    jax.block_until_ready(out3)
    assert jnp.allclose(out3, ref2, atol=5e-2, rtol=5e-2), "streaming f32 mismatch"

    print("KERNEL_OK")
</pallas_src>

<mosaic_0001>
module attributes {stable_mosaic.version = 11 : i64} {
  func.func @_resident_kernel(%arg0: i32, %arg1: memref<16x128xf32, #tpu.memory_space<vmem>>, %arg2: memref<1x128xf32, #tpu.memory_space<vmem>>, %arg3: memref<1x128xf32, #tpu.memory_space<vmem>>, %arg4: memref<128x128xf32, #tpu.memory_space<vmem>>, %arg5: memref<1x128xf32, #tpu.memory_space<vmem>>, %arg6: memref<1x128xf32, #tpu.memory_space<vmem>>, %arg7: memref<1x128xf32, #tpu.memory_space<vmem>>, %arg8: memref<128x128xf32, #tpu.memory_space<vmem>>, %arg9: memref<1x128xf32, #tpu.memory_space<vmem>>, %arg10: memref<16x128xf32, #tpu.memory_space<vmem>>) attributes {dimension_semantics = [#tpu.dimension_semantics<parallel>], iteration_bounds = array<i64: 1>, scalar_prefetch = 0 : i64, scratch_operands = 0 : i64, tpu.core_type = #tpu.core_type<tc>, window_params = [{transform_indices = @transform_0, window_bounds = array<i64: 16, 128>}, {pipeline_mode = #tpu.pipeline_mode<synchronous>, transform_indices = @transform_1, window_bounds = array<i64: 1, 128>}, {pipeline_mode = #tpu.pipeline_mode<synchronous>, transform_indices = @transform_2, window_bounds = array<i64: 1, 128>}, {pipeline_mode = #tpu.pipeline_mode<synchronous>, transform_indices = @transform_3, window_bounds = array<i64: 128, 128>}, {pipeline_mode = #tpu.pipeline_mode<synchronous>, transform_indices = @transform_4, window_bounds = array<i64: 1, 128>}, {pipeline_mode = #tpu.pipeline_mode<synchronous>, transform_indices = @transform_5, window_bounds = array<i64: 1, 128>}, {pipeline_mode = #tpu.pipeline_mode<synchronous>, transform_indices = @transform_6, window_bounds = array<i64: 1, 128>}, {pipeline_mode = #tpu.pipeline_mode<synchronous>, transform_indices = @transform_7, window_bounds = array<i64: 128, 128>}, {pipeline_mode = #tpu.pipeline_mode<synchronous>, transform_indices = @transform_8, window_bounds = array<i64: 1, 128>}, {transform_indices = @transform_9, window_bounds = array<i64: 16, 128>}]} {
    %c0 = arith.constant 0 : index
    %c0_0 = arith.constant 0 : index
    %0 = vector.load %arg1[%c0, %c0_0] : memref<16x128xf32, #tpu.memory_space<vmem>>, vector<16x128xf32>
    %c0_1 = arith.constant 0 : index
    %c0_2 = arith.constant 0 : index
    %1 = vector.load %arg2[%c0_1, %c0_2] : memref<1x128xf32, #tpu.memory_space<vmem>>, vector<1x128xf32>
    %c0_3 = arith.constant 0 : index
    %c0_4 = arith.constant 0 : index
    %2 = vector.load %arg3[%c0_3, %c0_4] : memref<1x128xf32, #tpu.memory_space<vmem>>, vector<1x128xf32>
    %cst = arith.constant dense<0.000000e+00> : vector<16xf32>
    %3 = vector.multi_reduction <add>, %0, %cst [1] : vector<16x128xf32> to vector<16xf32>
    %4 = vector.shape_cast %3 : vector<16xf32> to vector<16x1xf32>
    %5 = arith.mulf %0, %0 : vector<16x128xf32>
    %cst_5 = arith.constant dense<0.000000e+00> : vector<16xf32>
    %6 = vector.multi_reduction <add>, %5, %cst_5 [1] : vector<16x128xf32> to vector<16xf32>
    %7 = vector.shape_cast %6 : vector<16xf32> to vector<16x1xf32>
    %cst_6 = arith.constant 3.125000e-02 : f32
    %8 = vector.broadcast %cst_6 : f32 to vector<16x1xf32>
    %9 = arith.mulf %4, %8 : vector<16x1xf32>
    %cst_7 = arith.constant 3.125000e-02 : f32
    %10 = vector.broadcast %cst_7 : f32 to vector<16x1xf32>
    %11 = arith.mulf %7, %10 : vector<16x1xf32>
    %12 = arith.mulf %9, %9 : vector<16x1xf32>
    %13 = arith.subf %11, %12 : vector<16x1xf32>
    %cst_8 = arith.constant 0.000000e+00 : f32
    %14 = vector.broadcast %cst_8 : f32 to vector<16x1xf32>
    %15 = arith.maximumf %13, %14 : vector<16x1xf32>
    %16 = vector.broadcast %9 : vector<16x1xf32> to vector<16x128xf32>
    %17 = arith.subf %0, %16 : vector<16x128xf32>
    %cst_9 = arith.constant 9.99999974E-6 : f32
    %18 = vector.broadcast %cst_9 : f32 to vector<16x1xf32>
    %19 = arith.addf %15, %18 : vector<16x1xf32>
    %20 = math.rsqrt %19 : vector<16x1xf32>
    %21 = vector.broadcast %20 : vector<16x1xf32> to vector<16x128xf32>
    %22 = arith.mulf %17, %21 : vector<16x128xf32>
    %23 = vector.broadcast %1 : vector<1x128xf32> to vector<16x128xf32>
    %24 = arith.mulf %22, %23 : vector<16x128xf32>
    %25 = vector.broadcast %2 : vector<1x128xf32> to vector<16x128xf32>
    %26 = arith.addf %24, %25 : vector<16x128xf32>
    %c0_10 = arith.constant 0 : index
    %c0_11 = arith.constant 0 : index
    %27 = vector.load %arg4[%c0_10, %c0_11] : memref<128x128xf32, #tpu.memory_space<vmem>>, vector<128x128xf32>
    %cst_12 = arith.constant dense<0.000000e+00> : vector<16x128xf32>
    %28 = tpu.matmul %26, %27, %cst_12 {dimension_numbers = #tpu.dot_dimension_numbers<[1], [0], [0], [1], [0, 0, 1, 1], [], []>} : vector<16x128xf32>, vector<128x128xf32>, vector<16x128xf32> -> vector<16x128xf32>
    %c0_13 = arith.constant 0 : index
    %c0_14 = arith.constant 0 : index
    %29 = vector.load %arg5[%c0_13, %c0_14] : memref<1x128xf32, #tpu.memory_space<vmem>>, vector<1x128xf32>
    %30 = vector.broadcast %29 : vector<1x128xf32> to vector<16x128xf32>
    %31 = arith.addf %28, %30 : vector<16x128xf32>
    %cst_15 = arith.constant 5.000000e-01 : f32
    %32 = vector.broadcast %cst_15 : f32 to vector<16x128xf32>
    %33 = arith.mulf %32, %31 : vector<16x128xf32>
    %cst_16 = arith.constant 0.707106769 : f32
    %34 = vector.broadcast %cst_16 : f32 to vector<16x128xf32>
    %35 = arith.mulf %31, %34 : vector<16x128xf32>
    %36 = math.erf %35 : vector<16x128xf32>
    %cst_17 = arith.constant 1.000000e+00 : f32
    %37 = vector.broadcast %cst_17 : f32 to vector<16x128xf32>
    %38 = arith.addf %37, %36 : vector<16x128xf32>
    %39 = arith.mulf %33, %38 : vector<16x128xf32>
    %c0_18 = arith.constant 0 : index
    %c0_19 = arith.constant 0 : index
    %40 = vector.load %arg6[%c0_18, %c0_19] : memref<1x128xf32, #tpu.memory_space<vmem>>, vector<1x128xf32>
    %c0_20 = arith.constant 0 : index
    %c0_21 = arith.constant 0 : index
    %41 = vector.load %arg7[%c0_20, %c0_21] : memref<1x128xf32, #tpu.memory_space<vmem>>, vector<1x128xf32>
    %cst_22 = arith.constant dense<0.000000e+00> : vector<16xf32>
    %42 = vector.multi_reduction <add>, %39, %cst_22 [1] : vector<16x128xf32> to vector<16xf32>
    %43 = vector.shape_cast %42 : vector<16xf32> to vector<16x1xf32>
    %44 = arith.mulf %39, %39 : vector<16x128xf32>
    %cst_23 = arith.constant dense<0.000000e+00> : vector<16xf32>
    %45 = vector.multi_reduction <add>, %44, %cst_23 [1] : vector<16x128xf32> to vector<16xf32>
    %46 = vector.shape_cast %45 : vector<16xf32> to vector<16x1xf32>
    %cst_24 = arith.constant 1.562500e-02 : f32
    %47 = vector.broadcast %cst_24 : f32 to vector<16x1xf32>
    %48 = arith.mulf %43, %47 : vector<16x1xf32>
    %cst_25 = arith.constant 1.562500e-02 : f32
    %49 = vector.broadcast %cst_25 : f32 to vector<16x1xf32>
    %50 = arith.mulf %46, %49 : vector<16x1xf32>
    %51 = arith.mulf %48, %48 : vector<16x1xf32>
    %52 = arith.subf %50, %51 : vector<16x1xf32>
    %cst_26 = arith.constant 0.000000e+00 : f32
    %53 = vector.broadcast %cst_26 : f32 to vector<16x1xf32>
    %54 = arith.maximumf %52, %53 : vector<16x1xf32>
    %55 = vector.broadcast %48 : vector<16x1xf32> to vector<16x128xf32>
    %56 = arith.subf %39, %55 : vector<16x128xf32>
    %cst_27 = arith.constant 9.99999974E-6 : f32
    %57 = vector.broadcast %cst_27 : f32 to vector<16x1xf32>
    %58 = arith.addf %54, %57 : vector<16x1xf32>
    %59 = math.rsqrt %58 : vector<16x1xf32>
    %60 = vector.broadcast %59 : vector<16x1xf32> to vector<16x128xf32>
    %61 = arith.mulf %56, %60 : vector<16x128xf32>
    %62 = vector.broadcast %40 : vector<1x128xf32> to vector<16x128xf32>
    %63 = arith.mulf %61, %62 : vector<16x128xf32>
    %64 = vector.broadcast %41 : vector<1x128xf32> to vector<16x128xf32>
    %65 = arith.addf %63, %64 : vector<16x128xf32>
    %c0_28 = arith.constant 0 : index
    %c0_29 = arith.constant 0 : index
    %66 = vector.load %arg8[%c0_28, %c0_29] : memref<128x128xf32, #tpu.memory_space<vmem>>, vector<128x128xf32>
    %cst_30 = arith.constant dense<0.000000e+00> : vector<16x128xf32>
    %67 = tpu.matmul %65, %66, %cst_30 {dimension_numbers = #tpu.dot_dimension_numbers<[1], [0], [0], [1], [0, 0, 1, 1], [], []>} : vector<16x128xf32>, vector<128x128xf32>, vector<16x128xf32> -> vector<16x128xf32>
    %c0_31 = arith.constant 0 : index
    %c0_32 = arith.constant 0 : index
    %68 = vector.load %arg9[%c0_31, %c0_32] : memref<1x128xf32, #tpu.memory_space<vmem>>, vector<1x128xf32>
    %69 = vector.broadcast %68 : vector<1x128xf32> to vector<16x128xf32>
    %70 = arith.addf %67, %69 : vector<16x128xf32>
    %71 = arith.addf %70, %0 : vector<16x128xf32>
    %cst_33 = arith.constant 5.000000e-01 : f32
    %72 = vector.broadcast %cst_33 : f32 to vector<16x128xf32>
    %73 = arith.mulf %72, %71 : vector<16x128xf32>
    %cst_34 = arith.constant 0.707106769 : f32
    %74 = vector.broadcast %cst_34 : f32 to vector<16x128xf32>
    %75 = arith.mulf %71, %74 : vector<16x128xf32>
    %76 = math.erf %75 : vector<16x128xf32>
    %cst_35 = arith.constant 1.000000e+00 : f32
    %77 = vector.broadcast %cst_35 : f32 to vector<16x128xf32>
    %78 = arith.addf %77, %76 : vector<16x128xf32>
    %79 = arith.mulf %73, %78 : vector<16x128xf32>
    %c0_36 = arith.constant 0 : index
    %c0_37 = arith.constant 0 : index
    %80 = vector.load %arg10[%c0_36, %c0_37] : memref<16x128xf32, #tpu.memory_space<vmem>>, vector<16x128xf32>
    tpu.vector_store %arg10[%c0_36, %c0_37], %79 {strides = array<i32>} : memref<16x128xf32, #tpu.memory_space<vmem>>, vector<16x128xf32>,
    return
  }
  func.func @transform_0(%arg0: i32) -> (i32, i32) {
    %c0_i32 = arith.constant 0 : i32
    %c0_i32_0 = arith.constant 0 : i32
    return %arg0, %c0_i32 : i32, i32
  }
  func.func @transform_1(%arg0: i32) -> (i32, i32) {
    %c0_i32 = arith.constant 0 : i32
    %c0_i32_0 = arith.constant 0 : i32
    %c0_i32_1 = arith.constant 0 : i32
    return %c0_i32, %c0_i32_0 : i32, i32
  }
  func.func @transform_2(%arg0: i32) -> (i32, i32) {
    %c0_i32 = arith.constant 0 : i32
    %c0_i32_0 = arith.constant 0 : i32
    %c0_i32_1 = arith.constant 0 : i32
    return %c0_i32, %c0_i32_0 : i32, i32
  }
  func.func @transform_3(%arg0: i32) -> (i32, i32) {
    %c0_i32 = arith.constant 0 : i32
    %c0_i32_0 = arith.constant 0 : i32
    %c0_i32_1 = arith.constant 0 : i32
    return %c0_i32, %c0_i32_0 : i32, i32
  }
  func.func @transform_4(%arg0: i32) -> (i32, i32) {
    %c0_i32 = arith.constant 0 : i32
    %c0_i32_0 = arith.constant 0 : i32
    %c0_i32_1 = arith.constant 0 : i32
    return %c0_i32, %c0_i32_0 : i32, i32
  }
  func.func @transform_5(%arg0: i32) -> (i32, i32) {
    %c0_i32 = arith.constant 0 : i32
    %c0_i32_0 = arith.constant 0 : i32
    %c0_i32_1 = arith.constant 0 : i32
    return %c0_i32, %c0_i32_0 : i32, i32
  }
  func.func @transform_6(%arg0: i32) -> (i32, i32) {
    %c0_i32 = arith.constant 0 : i32
    %c0_i32_0 = arith.constant 0 : i32
    %c0_i32_1 = arith.constant 0 : i32
    return %c0_i32, %c0_i32_0 : i32, i32
  }
  func.func @transform_7(%arg0: i32) -> (i32, i32) {
    %c0_i32 = arith.constant 0 : i32
    %c0_i32_0 = arith.constant 0 : i32
    %c0_i32_1 = arith.constant 0 : i32
    return %c0_i32, %c0_i32_0 : i32, i32
  }
  func.func @transform_8(%arg0: i32) -> (i32, i32) {
    %c0_i32 = arith.constant 0 : i32
    %c0_i32_0 = arith.constant 0 : i32
    %c0_i32_1 = arith.constant 0 : i32
    return %c0_i32, %c0_i32_0 : i32, i32
  }
  func.func @transform_9(%arg0: i32) -> (i32, i32) {
    %c0_i32 = arith.constant 0 : i32
    %c0_i32_0 = arith.constant 0 : i32
    return %arg0, %c0_i32 : i32, i32
  }
}

</mosaic_0001>

<llo_original>
// kernel: _basicff_impl.1
$region0: #{_basicff_impl.1}
  #allocation0 [shape = 'u32[]', space=smem, size = 0x4, offset = 0x4, fixed_abs, tag = 'smem constant byte address 0x4 - core index']
  #allocation1 [shape = 'u32[72,128]{1,0:T(1,128)}', space=vmem, size = 0x9000, scoped, tag = 'internal scratch']
  %s0 = inlined_call_operand.vmem [shape: f32[16,128], index: 0, kind: input, shape index: {}]
  %s1 = inlined_call_operand.vmem [shape: f32[1,128], index: 1, kind: input, shape index: {}]
  %s2 = inlined_call_operand.vmem [shape: f32[1,128], index: 2, kind: input, shape index: {}]
  %s3 = inlined_call_operand.hbm [shape: f32[128,128], index: 3, kind: input, shape index: {}]
  %s4 = inlined_call_operand.vmem [shape: f32[1,128], index: 4, kind: input, shape index: {}]
  %s5 = inlined_call_operand.vmem [shape: f32[1,128], index: 5, kind: input, shape index: {}]
  %s6 = inlined_call_operand.vmem [shape: f32[1,128], index: 6, kind: input, shape index: {}]
  %s7 = inlined_call_operand.hbm [shape: f32[128,128], index: 7, kind: input, shape index: {}]
  %s8 = inlined_call_operand.vmem [shape: f32[1,128], index: 8, kind: input, shape index: {}]
  %s9 = inlined_call_operand.hbm [shape: f32[16,128], index: 9, kind: output, shape index: {}]
  %s10 = sld [smem:[#allocation0]]
  $region54: #{_basicff_impl.1} parent=0
    _
  %s12 = ssub.s32 1, %s10
  %s13 = scalar_select 0, %s12, %s10
  $region1: #{_basicff_impl.1} parent=0
    #allocation2 [shape = 'u8[65536]{0}', space=vmem, size = 0x10000, scoped, tag = 'input window, operand 3, single buffered']
    #allocation3 [shape = 's32[1]{0}', space=sflag, size = 0x4, scoped, tag = 'scoped memory for _basicff_impl.1']
    #allocation4 [shape = 's32[1]{0}', space=sflag, size = 0x4, scoped, tag = 'scoped memory for _basicff_impl.1']
    #allocation5 [shape = 'u8[65536]{0}', space=vmem, size = 0x10000, scoped, tag = 'input window, operand 7, single buffered']
    #allocation6 [shape = 's32[1]{0}', space=sflag, size = 0x4, scoped, tag = 'scoped memory for _basicff_impl.1']
    #allocation7 [shape = 'u8[8192]{0}', space=vmem, size = 0x2000, scoped, tag = 'output window, operand 0, single buffered']
    %14 = vsyncpa [#allocation3], 0
    %15 = vsyncpa [#allocation6], 0
    %16 = vsyncpa [#allocation4], 0
    // Predicated region
    $region2: #{_basicff_impl.1} parent=1 // pred_check
      _
    $region3: #{_basicff_impl.1} parent=1 // pred_check_branch
      %18 = sbr.rel (0) target = $region5
    $region4: #{_basicff_impl.1} parent=1 // pred_region
      _
    $region5: #{_basicff_impl.1} parent=1 // pred_fallthru
      _
    // Predicated region
    $region6: #{_basicff_impl.1} parent=1 // pred_check
      _
    $region7: #{_basicff_impl.1} parent=1 // pred_check_branch
      %20 = sbr.rel (0) target = $region9
    $region8: #{_basicff_impl.1} parent=1 // pred_region
      _
    $region9: #{_basicff_impl.1} parent=1 // pred_fallthru
      _
    // Predicated region
    $region10: #{_basicff_impl.1} parent=1 // pred_check
      _
    $region11: #{_basicff_impl.1} parent=1 // pred_check_branch
      %22 = sbr.rel (0) target = $region13
    $region12: #{_basicff_impl.1} parent=1 // pred_region
      _
    $region13: #{_basicff_impl.1} parent=1 // pred_fallthru
      _
    // Predicated region
    $region14: #{_basicff_impl.1} parent=1 // pred_check
      _
    $region15: #{_basicff_impl.1} parent=1 // pred_check_branch
      %24 = sbr.rel (0) target = $region17
    $region16: #{_basicff_impl.1} parent=1 // pred_region
      %26 = vsyncadd [#allocation3], 0
      %s27 = sshll.u32 %s3, 4
      %s28 = int_to_ptr.hbm [resolvable:$true] %s27
      %s29 = sshll.u32 [#allocation2], 4
      %s30 = int_to_ptr.vmem [resolvable:$true] %s29
      %35 = dma.hbm_to_vmem [thread:$0]  %s28, 2048, %s30, [#allocation3], 128, 128, 8
    $region17: #{_basicff_impl.1} parent=1 // pred_fallthru
      _
    // Predicated region
    $region18: #{_basicff_impl.1} parent=1 // pred_check
      _
    $region19: #{_basicff_impl.1} parent=1 // pred_check_branch
      %37 = sbr.rel (0) target = $region21
    $region20: #{_basicff_impl.1} parent=1 // pred_region
      _
    $region21: #{_basicff_impl.1} parent=1 // pred_fallthru
      _
    // Predicated region
    $region22: #{_basicff_impl.1} parent=1 // pred_check
      _
    $region23: #{_basicff_impl.1} parent=1 // pred_check_branch
      %39 = sbr.rel (0) target = $region25
    $region24: #{_basicff_impl.1} parent=1 // pred_region
      _
    $region25: #{_basicff_impl.1} parent=1 // pred_fallthru
      _
    // Predicated region
    $region26: #{_basicff_impl.1} parent=1 // pred_check
      _
    $region27: #{_basicff_impl.1} parent=1 // pred_check_branch
      %41 = sbr.rel (0) target = $region29
    $region28: #{_basicff_impl.1} parent=1 // pred_region
      _
    $region29: #{_basicff_impl.1} parent=1 // pred_fallthru
      _
    // Predicated region
    $region30: #{_basicff_impl.1} parent=1 // pred_check
      _
    $region31: #{_basicff_impl.1} parent=1 // pred_check_branch
      %43 = sbr.rel (0) target = $region33
    $region32: #{_basicff_impl.1} parent=1 // pred_region
      %45 = vsyncadd [#allocation6], 0
      %s46 = sshll.u32 %s7, 4
      %s47 = int_to_ptr.hbm [resolvable:$true] %s46
      %s48 = sshll.u32 [#allocation5], 4
      %s49 = int_to_ptr.vmem [resolvable:$true] %s48
      %54 = dma.hbm_to_vmem [thread:$0]  %s47, 2048, %s49, [#allocation6], 128, 128, 8
    $region33: #{_basicff_impl.1} parent=1 // pred_fallthru
      _
    // Predicated region
    $region34: #{_basicff_impl.1} parent=1 // pred_check
      _
    $region35: #{_basicff_impl.1} parent=1 // pred_check_branch
      %56 = sbr.rel (0) target = $region37
    $region36: #{_basicff_impl.1} parent=1 // pred_region
      _
    $region37: #{_basicff_impl.1} parent=1 // pred_fallthru
      _
    // Predicated region
    $region38: #{_basicff_impl.1} parent=1 // pred_check
      _
    $region39: #{_basicff_impl.1} parent=1 // pred_check_branch
      %58 = sbr.rel (0) target = $region41
    $region40: #{_basicff_impl.1} parent=1 // pred_region
      %60 = dma.done [#allocation3], 2048
    $region41: #{_basicff_impl.1} parent=1 // pred_fallthru
      _
    // Predicated region
    $region42: #{_basicff_impl.1} parent=1 // pred_check
      _
    $region43: #{_basicff_impl.1} parent=1 // pred_check_branch
      %62 = sbr.rel (0) target = $region45
    $region44: #{_basicff_impl.1} parent=1 // pred_region
      %64 = dma.done [#allocation6], 2048
    $region45: #{_basicff_impl.1} parent=1 // pred_fallthru
      _
    %v65 = vld [vmem:[%s0] sm:$0xff]
    %v66 = vld [vmem:[%s0 + $0x8] sm:$0xff]
    %v67 = vld [vmem:[%s1] sm:$0x1]
    %v68 = vld [vmem:[%s2] sm:$0x1]
    %69 = vadd.xlane.f32.xlu0 %v65
    %v70 = vpop.xlane.xlu0 %69
    %71 = vadd.xlane.f32.xlu0 %v66
    %v72 = vpop.xlane.xlu0 %71
    %v73 = vmul.f32 %v65, %v65
    %v74 = vmul.f32 %v66, %v66
    %75 = vadd.xlane.f32.xlu0 %v73
    %v76 = vpop.xlane.xlu0 %75
    %77 = vadd.xlane.f32.xlu0 %v74
    %v78 = vpop.xlane.xlu0 %77
    %v79 = vmul.f32 %v70, 0.03125
    %v80 = vmul.f32 %v72, 0.03125
    %v81 = vmul.f32 %v76, 0.03125
    %v82 = vmul.f32 %v78, 0.03125
    %v83 = vmul.f32 %v79, %v79
    %v84 = vmul.f32 %v80, %v80
    %v85 = vsub.f32 %v81, %v83
    %v86 = vsub.f32 %v82, %v84
    %v87 = vmax.f32 %v85, 0.0
    %v88 = vmax.f32 %v86, 0.0
    %v89 = vsub.f32 %v65, %v79
    %v90 = vsub.f32 %v66, %v80
    %v91 = vadd.f32 %v87, 1e-05
    %v92 = vadd.f32 %v88, 1e-05
    %v93 = vrsqrt.pop %v91
    %v94 = vmul.f32 %v93, %v91
    %v95 = vmul.f32 %v94, %v93
    %v96 = vmul.f32 0.5, %v95
    %v97 = vsub.f32 1.5, %v96
    %v98 = vmul.f32 %v93, %v97
    %vm99 = vweird.f32 %v91
    %vm100 = vweird.f32 %v93
    %vm101 = vmor %vm99, %vm100
    %v102 = vsel %vm101, %v93, %v98
    %v103 = vrsqrt.pop %v92
    %v104 = vmul.f32 %v103, %v92
    %v105 = vmul.f32 %v104, %v103
    %v106 = vmul.f32 0.5, %v105
    %v107 = vsub.f32 1.5, %v106
    %v108 = vmul.f32 %v103, %v107
    %vm109 = vweird.f32 %v92
    %vm110 = vweird.f32 %v103
    %vm111 = vmor %vm109, %vm110
    %v112 = vsel %vm111, %v103, %v108
    %v113 = vmul.f32 %v89, %v102
    %v114 = vmul.f32 %v90, %v112
    %v116 = vperm.slane %v67, 0
    %v118 = vmul.f32 %v113, %v116
    %v119 = vmul.f32 %v114, %v116
    %v121 = vperm.slane %v68, 0
    %v123 = vadd.f32 %v118, %v121
    %v124 = vadd.f32 %v119, %v121
    %v125 = vld [vmem:[#allocation2] sm:$0xff]
    %v126 = vld [vmem:[#allocation2 + $0x8] sm:$0xff]
    %v127 = vld [vmem:[#allocation2 + $0x10] sm:$0xff]
    %v128 = vld [vmem:[#allocation2 + $0x18] sm:$0xff]
    %v129 = vld [vmem:[#allocation2 + $0x20] sm:$0xff]
    %v130 = vld [vmem:[#allocation2 + $0x28] sm:$0xff]
    %v131 = vld [vmem:[#allocation2 + $0x30] sm:$0xff]
    %v132 = vld [vmem:[#allocation2 + $0x38] sm:$0xff]
    %v133 = vld [vmem:[#allocation2 + $0x40] sm:$0xff]
    %v134 = vld [vmem:[#allocation2 + $0x48] sm:$0xff]
    %v135 = vld [vmem:[#allocation2 + $0x50] sm:$0xff]
    %v136 = vld [vmem:[#allocation2 + $0x58] sm:$0xff]
    %v137 = vld [vmem:[#allocation2 + $0x60] sm:$0xff]
    %v138 = vld [vmem:[#allocation2 + $0x68] sm:$0xff]
    %v139 = vld [vmem:[#allocation2 + $0x70] sm:$0xff]
    %v140 = vld [vmem:[#allocation2 + $0x78] sm:$0xff]
    %v141 = vld [vmem:[%s4] sm:$0x1]
    %v143 = vperm.slane %v141, 0
    %145 = vmatpush.msra.mxu0 %v140
    %146 = vmatpush.msra.mxu0 %v139
    %147 = vmatpush.msra.mxu0 %v138
    %148 = vmatpush.msra.mxu0 %v137
    %149 = vmatpush.msra.mxu0 %v136
    %150 = vmatpush.msra.mxu0 %v135
    %151 = vmatpush.msra.mxu0 %v134
    %152 = vmatpush.msra.mxu0 %v133
    %153 = vmatpush.msra.mxu0 %v132
    %154 = vmatpush.msra.mxu0 %v131
    %155 = vmatpush.msra.mxu0 %v130
    %156 = vmatpush.msra.mxu0 %v129
    %157 = vmatpush.msra.mxu0 %v128
    %158 = vmatpush.msra.mxu0 %v127
    %159 = vmatpush.msra.mxu0 %v126
    %160 = vmatpush.msra.mxu0 %v125
    %161 = vmatmul.f32.gmra.mxu0 %v123
    %v162 = vpop.f32.mrf.mxu0
    %v163 = vadd.f32 %v143, %v162
    %164 = vmatmul.f32.gmra.mxu0 %v124
    %v165 = vpop.f32.mrf.mxu0
    %v166 = vadd.f32 %v143, %v165
    %167 = vdwg.mxu0
    %v168 = vmul.f32 %v163, 0.5
    %v169 = vmul.f32 %v166, 0.5
    %v170 = vmul.f32 %v163, 0.70710677
    %v171 = vmul.f32 %v166, 0.70710677
    %v172 = vmul.f32 %v170, %v170
    %v173 = vmin.f32 16.0, %v172
    %v174 = vmul.f32 %v173, 2.1237322e-06
    %v175 = vadd.f32 %v174, 0.00028619796
    %v176 = vmul.f32 %v173, %v175
    %v177 = vadd.f32 %v176, 0.0036580483
    %v178 = vmul.f32 %v173, %v177
    %v179 = vadd.f32 %v178, 0.05243302
    %v180 = vmul.f32 %v173, %v179
    %v181 = vadd.f32 %v180, 0.18741608
    %v182 = vmul.f32 %v173, %v181
    %v183 = vadd.f32 %v182, 1.1283791
    %v184 = vmul.f32 %v170, %v183
    %v185 = vmul.f32 %v173, 3.8918573e-05
    %v186 = vadd.f32 %v185, 0.001143296
    %v187 = vmul.f32 %v173, %v186
    %v188 = vadd.f32 %v187, 0.014752088
    %v189 = vmul.f32 %v173, %v188
    %v190 = vadd.f32 %v189, 0.112945676
    %v191 = vmul.f32 %v173, %v190
    %v192 = vadd.f32 %v191, 0.4994258
    %v193 = vmul.f32 %v173, %v192
    %v194 = vadd.f32 %v193, 1.0
    %v195 = vrcp.pop %v194
    %v196 = vmul.f32 %v194, %v195
    %v197 = vsub.f32 1.0, %v196
    %v198 = vmul.f32 %v195, %v197
    %v199 = vadd.f32 %v195, %v198
    %vm200 = vweird.f32 %v194
    %vm201 = vweird.f32 %v195
    %vm202 = vmor %vm200, %vm201
    %v203 = vsel %vm202, %v195, %v199
    %v204 = vand.u32 2147483647, %v194
    %vm205 = vcmp.eq.f32.partialorder %v204, 8.507059e+37
    %v206 = vand.u32 %v194, 2147483648
    %v207 = vor.u32 1.1754944e-38, %v206
    %v208 = vsel %vm205, %v207, %v203
    %v209 = vmul.f32 %v184, %v208
    %v210 = vmin.f32 %v209, 1.0
    %v211 = vmax.f32 %v210, -1.0
    %v212 = vmul.f32 %v171, %v171
    %v213 = vmin.f32 16.0, %v212
    %v214 = vmul.f32 %v213, 2.1237322e-06
    %v215 = vadd.f32 %v214, 0.00028619796
    %v216 = vmul.f32 %v213, %v215
    %v217 = vadd.f32 %v216, 0.0036580483
    %v218 = vmul.f32 %v213, %v217
    %v219 = vadd.f32 %v218, 0.05243302
    %v220 = vmul.f32 %v213, %v219
    %v221 = vadd.f32 %v220, 0.18741608
    %v222 = vmul.f32 %v213, %v221
    %v223 = vadd.f32 %v222, 1.1283791
    %v224 = vmul.f32 %v171, %v223
    %v225 = vmul.f32 %v213, 3.8918573e-05
    %v226 = vadd.f32 %v225, 0.001143296
    %v227 = vmul.f32 %v213, %v226
    %v228 = vadd.f32 %v227, 0.014752088
    %v229 = vmul.f32 %v213, %v228
    %v230 = vadd.f32 %v229, 0.112945676
    %v231 = vmul.f32 %v213, %v230
    %v232 = vadd.f32 %v231, 0.4994258
    %v233 = vmul.f32 %v213, %v232
    %v234 = vadd.f32 %v233, 1.0
    %v235 = vrcp.pop %v234
    %v236 = vmul.f32 %v234, %v235
    %v237 = vsub.f32 1.0, %v236
    %v238 = vmul.f32 %v235, %v237
    %v239 = vadd.f32 %v235, %v238
    %vm240 = vweird.f32 %v234
    %vm241 = vweird.f32 %v235
    %vm242 = vmor %vm240, %vm241
    %v243 = vsel %vm242, %v235, %v239
    %v244 = vand.u32 2147483647, %v234
    %vm245 = vcmp.eq.f32.partialorder %v244, 8.507059e+37
    %v246 = vand.u32 %v234, 2147483648
    %v247 = vor.u32 1.1754944e-38, %v246
    %v248 = vsel %vm245, %v247, %v243
    %v249 = vmul.f32 %v224, %v248
    %v250 = vmin.f32 %v249, 1.0
    %v251 = vmax.f32 %v250, -1.0
    %v252 = vadd.f32 %v211, 1.0
    %v253 = vadd.f32 %v251, 1.0
    %v254 = vmul.f32 %v168, %v252
    %v255 = vmul.f32 %v169, %v253
    %v256 = vld [vmem:[%s5] sm:$0x1]
    %v257 = vld [vmem:[%s6] sm:$0x1]
    %258 = vadd.xlane.f32.xlu0 %v254
    %v259 = vpop.xlane.xlu0 %258
    %260 = vadd.xlane.f32.xlu0 %v255
    %v261 = vpop.xlane.xlu0 %260
    %v262 = vmul.f32 %v254, %v254
    %v263 = vmul.f32 %v255, %v255
    %264 = vadd.xlane.f32.xlu0 %v262
    %v265 = vpop.xlane.xlu0 %264
    %266 = vadd.xlane.f32.xlu0 %v263
    %v267 = vpop.xlane.xlu0 %266
    %v268 = vmul.f32 %v259, 0.015625
    %v269 = vmul.f32 %v261, 0.015625
    %v270 = vmul.f32 %v265, 0.015625
    %v271 = vmul.f32 %v267, 0.015625
    %v272 = vmul.f32 %v268, %v268
    %v273 = vmul.f32 %v269, %v269
    %v274 = vsub.f32 %v270, %v272
    %v275 = vsub.f32 %v271, %v273
    %v276 = vmax.f32 %v274, 0.0
    %v277 = vmax.f32 %v275, 0.0
    %v278 = vsub.f32 %v254, %v268
    %v279 = vsub.f32 %v255, %v269
    %v280 = vadd.f32 %v276, 1e-05
    %v281 = vadd.f32 %v277, 1e-05
    %v282 = vrsqrt.pop %v280
    %v283 = vmul.f32 %v282, %v280
    %v284 = vmul.f32 %v283, %v282
    %v285 = vmul.f32 0.5, %v284
    %v286 = vsub.f32 1.5, %v285
    %v287 = vmul.f32 %v282, %v286
    %vm288 = vweird.f32 %v280
    %vm289 = vweird.f32 %v282
    %vm290 = vmor %vm288, %vm289
    %v291 = vsel %vm290, %v282, %v287
    %v292 = vrsqrt.pop %v281
    %v293 = vmul.f32 %v292, %v281
    %v294 = vmul.f32 %v293, %v292
    %v295 = vmul.f32 0.5, %v294
    %v296 = vsub.f32 1.5, %v295
    %v297 = vmul.f32 %v292, %v296
    %vm298 = vweird.f32 %v281
    %vm299 = vweird.f32 %v292
    %vm300 = vmor %vm298, %vm299
    %v301 = vsel %vm300, %v292, %v297
    %v302 = vmul.f32 %v278, %v291
    %v303 = vmul.f32 %v279, %v301
    %v305 = vperm.slane %v256, 0
    %v307 = vmul.f32 %v302, %v305
    %v308 = vmul.f32 %v303, %v305
    %v310 = vperm.slane %v257, 0
    %v312 = vadd.f32 %v307, %v310
    %v313 = vadd.f32 %v308, %v310
    %v314 = vld [vmem:[#allocation5] sm:$0xff]
    %v315 = vld [vmem:[#allocation5 + $0x8] sm:$0xff]
    %v316 = vld [vmem:[#allocation5 + $0x10] sm:$0xff]
    %v317 = vld [vmem:[#allocation5 + $0x18] sm:$0xff]
    %v318 = vld [vmem:[#allocation5 + $0x20] sm:$0xff]
    %v319 = vld [vmem:[#allocation5 + $0x28] sm:$0xff]
    %v320 = vld [vmem:[#allocation5 + $0x30] sm:$0xff]
    %v321 = vld [vmem:[#allocation5 + $0x38] sm:$0xff]
    %v322 = vld [vmem:[#allocation5 + $0x40] sm:$0xff]
    %v323 = vld [vmem:[#allocation5 + $0x48] sm:$0xff]
    %v324 = vld [vmem:[#allocation5 + $0x50] sm:$0xff]
    %v325 = vld [vmem:[#allocation5 + $0x58] sm:$0xff]
    %v326 = vld [vmem:[#allocation5 + $0x60] sm:$0xff]
    %v327 = vld [vmem:[#allocation5 + $0x68] sm:$0xff]
    %v328 = vld [vmem:[#allocation5 + $0x70] sm:$0xff]
    %v329 = vld [vmem:[#allocation5 + $0x78] sm:$0xff]
    %v330 = vld [vmem:[%s8] sm:$0x1]
    %v332 = vperm.slane %v330, 0
    %334 = vmatpush.msra.mxu0 %v329
    %335 = vmatpush.msra.mxu0 %v328
    %336 = vmatpush.msra.mxu0 %v327
    %337 = vmatpush.msra.mxu0 %v326
    %338 = vmatpush.msra.mxu0 %v325
    %339 = vmatpush.msra.mxu0 %v324
    %340 = vmatpush.msra.mxu0 %v323
    %341 = vmatpush.msra.mxu0 %v322
    %342 = vmatpush.msra.mxu0 %v321
    %343 = vmatpush.msra.mxu0 %v320
    %344 = vmatpush.msra.mxu0 %v319
    %345 = vmatpush.msra.mxu0 %v318
    %346 = vmatpush.msra.mxu0 %v317
    %347 = vmatpush.msra.mxu0 %v316
    %348 = vmatpush.msra.mxu0 %v315
    %349 = vmatpush.msra.mxu0 %v314
    %350 = vmatmul.f32.gmra.mxu0 %v312
    %v351 = vpop.f32.mrf.mxu0
    %v352 = vadd.f32 %v332, %v351
    %353 = vmatmul.f32.gmra.mxu0 %v313
    %v354 = vpop.f32.mrf.mxu0
    %v355 = vadd.f32 %v332, %v354
    %356 = vdwg.mxu0
    %v357 = vadd.f32 %v352, %v65
    %v358 = vadd.f32 %v355, %v66
    %v359 = vmul.f32 %v357, 0.5
    %v360 = vmul.f32 %v358, 0.5
    %v361 = vmul.f32 %v357, 0.70710677
    %v362 = vmul.f32 %v358, 0.70710677
    %v363 = vmul.f32 %v361, %v361
    %v364 = vmin.f32 16.0, %v363
    %v365 = vmul.f32 %v364, 2.1237322e-06
    %v366 = vadd.f32 %v365, 0.00028619796
    %v367 = vmul.f32 %v364, %v366
    %v368 = vadd.f32 %v367, 0.0036580483
    %v369 = vmul.f32 %v364, %v368
    %v370 = vadd.f32 %v369, 0.05243302
    %v371 = vmul.f32 %v364, %v370
    %v372 = vadd.f32 %v371, 0.18741608
    %v373 = vmul.f32 %v364, %v372
    %v374 = vadd.f32 %v373, 1.1283791
    %v375 = vmul.f32 %v361, %v374
    %v376 = vmul.f32 %v364, 3.8918573e-05
    %v377 = vadd.f32 %v376, 0.001143296
    %v378 = vmul.f32 %v364, %v377
    %v379 = vadd.f32 %v378, 0.014752088
    %v380 = vmul.f32 %v364, %v379
    %v381 = vadd.f32 %v380, 0.112945676
    %v382 = vmul.f32 %v364, %v381
    %v383 = vadd.f32 %v382, 0.4994258
    %v384 = vmul.f32 %v364, %v383
    %v385 = vadd.f32 %v384, 1.0
    %v386 = vrcp.pop %v385
    %v387 = vmul.f32 %v385, %v386
    %v388 = vsub.f32 1.0, %v387
    %v389 = vmul.f32 %v386, %v388
    %v390 = vadd.f32 %v386, %v389
    %vm391 = vweird.f32 %v385
    %vm392 = vweird.f32 %v386
    %vm393 = vmor %vm391, %vm392
    %v394 = vsel %vm393, %v386, %v390
    %v395 = vand.u32 2147483647, %v385
    %vm396 = vcmp.eq.f32.partialorder %v395, 8.507059e+37
    %v397 = vand.u32 %v385, 2147483648
    %v398 = vor.u32 1.1754944e-38, %v397
    %v399 = vsel %vm396, %v398, %v394
    %v400 = vmul.f32 %v375, %v399
    %v401 = vmin.f32 %v400, 1.0
    %v402 = vmax.f32 %v401, -1.0
    %v403 = vmul.f32 %v362, %v362
    %v404 = vmin.f32 16.0, %v403
    %v405 = vmul.f32 %v404, 2.1237322e-06
    %v406 = vadd.f32 %v405, 0.00028619796
    %v407 = vmul.f32 %v404, %v406
    %v408 = vadd.f32 %v407, 0.0036580483
    %v409 = vmul.f32 %v404, %v408
    %v410 = vadd.f32 %v409, 0.05243302
    %v411 = vmul.f32 %v404, %v410
    %v412 = vadd.f32 %v411, 0.18741608
    %v413 = vmul.f32 %v404, %v412
    %v414 = vadd.f32 %v413, 1.1283791
    %v415 = vmul.f32 %v362, %v414
    %v416 = vmul.f32 %v404, 3.8918573e-05
    %v417 = vadd.f32 %v416, 0.001143296
    %v418 = vmul.f32 %v404, %v417
    %v419 = vadd.f32 %v418, 0.014752088
    %v420 = vmul.f32 %v404, %v419
    %v421 = vadd.f32 %v420, 0.112945676
    %v422 = vmul.f32 %v404, %v421
    %v423 = vadd.f32 %v422, 0.4994258
    %v424 = vmul.f32 %v404, %v423
    %v425 = vadd.f32 %v424, 1.0
    %v426 = vrcp.pop %v425
    %v427 = vmul.f32 %v425, %v426
    %v428 = vsub.f32 1.0, %v427
    %v429 = vmul.f32 %v426, %v428
    %v430 = vadd.f32 %v426, %v429
    %vm431 = vweird.f32 %v425
    %vm432 = vweird.f32 %v426
    %vm433 = vmor %vm431, %vm432
    %v434 = vsel %vm433, %v426, %v430
    %v435 = vand.u32 2147483647, %v425
    %vm436 = vcmp.eq.f32.partialorder %v435, 8.507059e+37
    %v437 = vand.u32 %v425, 2147483648
    %v438 = vor.u32 1.1754944e-38, %v437
    %v439 = vsel %vm436, %v438, %v434
    %v440 = vmul.f32 %v415, %v439
    %v441 = vmin.f32 %v440, 1.0
    %v442 = vmax.f32 %v441, -1.0
    %v443 = vadd.f32 %v402, 1.0
    %v444 = vadd.f32 %v442, 1.0
    %v445 = vmul.f32 %v359, %v443
    %v446 = vmul.f32 %v360, %v444
    %447 = vst [vmem:[#allocation7] sm:$0xff] %v445
    %448 = vst [vmem:[#allocation7 + $0x8] sm:$0xff] %v446
    // Predicated region
    $region46: #{_basicff_impl.1} parent=1 // pred_check
      _
    $region47: #{_basicff_impl.1} parent=1 // pred_check_branch
      %450 = sbr.rel (0) target = $region49
    $region48: #{_basicff_impl.1} parent=1 // pred_region
      %452 = vsyncadd [#allocation4], 0
      %s453 = sshll.u32 [#allocation7], 4
      %s454 = int_to_ptr.vmem [resolvable:$true] %s453
      %s455 = sshll.u32 %s9, 4
      %s456 = int_to_ptr.hbm [resolvable:$true] %s455
      %461 = dma.vmem_to_hbm [thread:$0]  %s454, 256, %s456, [#allocation4], 128, 128, 8
    $region49: #{_basicff_impl.1} parent=1 // pred_fallthru
      _
    // Predicated region
    $region50: #{_basicff_impl.1} parent=1 // pred_check
      _
    $region51: #{_basicff_impl.1} parent=1 // pred_check_branch
      %463 = sbr.rel (0) target = $region53
    $region52: #{_basicff_impl.1} parent=1 // pred_region
      %465 = dma.done [#allocation4], 256
    $region53: #{_basicff_impl.1} parent=1 // pred_fallthru
      _
    %466 = vsyncpa [#allocation3], 1
    %467 = vsyncpa [#allocation6], 1
    %468 = vsyncpa [#allocation4], 1

</llo_original>
